<compile_context>
chip_gen: v7x
topology: tpu7x:2x2x1
jax: 0.10.0
libtpu: 0.0.40
codegen_flags: <defaults>
</compile_context>

<pallas_src>
import jax
import jax.numpy as jnp
from jax import lax
from jax.experimental import pallas as pl
from jax.experimental.pallas import tpu as pltpu


def _fps_kernel(x_ref, y_ref, acc_ref):
    # x_ref  : (C, Bt, N)  channel-major input tile (batch on the sublane axis)
    # y_ref  : (C, Bt, S)  output tile
    # acc_ref: (C, Bt, S)  f32 scratch holding the gathered columns
    x = x_ref[...].astype(jnp.float32)          # (C, Bt, N)
    C, Bt, N = x.shape
    S = y_ref.shape[-1]

    lane_ids = lax.broadcasted_iota(jnp.int32, (Bt, N), 1)   # point indices
    out_pos = lax.broadcasted_iota(jnp.int32, (Bt, S), 1)    # output slots

    # hoisted squared norm of every point: (Bt, N), sublane-dense
    sq = jnp.sum(x * x, axis=0)

    acc_ref[...] = jnp.zeros_like(acc_ref)

    def body(i, carry):
        farthest, min_dist = carry              # (Bt,1) i32, (Bt,N) f32
        # Select the current farthest point of each batch row via a one-hot
        # lane mask (no dynamic lane gather on TPU -> masked lane reduction).
        mask = lane_ids == farthest                                   # (Bt, N)
        sel = jnp.sum(jnp.where(mask[None], x, 0.0),
                      axis=2, keepdims=True)                          # (C, Bt, 1)
        # Store the selected column into output slot i (masked lane update,
        # exact copy of the input coordinates -- no MXU pass involved).
        acc_ref[...] = jnp.where(out_pos[None] == i, sel, acc_ref[...])
        # Squared distance of every point to the newly selected point:
        # d = |x|^2 - 2 <x, sel> + |sel|^2
        sq_sel = jnp.sum(sel * sel, axis=0)                           # (Bt, 1)
        cross = jnp.sum(x * sel, axis=0)                              # (Bt, N)
        d = sq - 2.0 * cross + sq_sel
        min_dist = jnp.minimum(min_dist, d)
        # next farthest = first index attaining the max of min_dist (per batch)
        mx = jnp.max(min_dist, axis=1, keepdims=True)                 # (Bt, 1)
        farthest = jnp.min(
            jnp.where(min_dist == mx, lane_ids, jnp.int32(N)),
            axis=1, keepdims=True).astype(jnp.int32)
        return farthest, min_dist

    init = (
        jnp.zeros((Bt, 1), jnp.int32),             # FPS starts at point 0
        jnp.full((Bt, N), 1e10, jnp.float32),      # running min distances
    )
    lax.fori_loop(0, S, body, init)

    y_ref[...] = acc_ref[...].astype(y_ref.dtype)


def fps_sample(x, num_out_points, *, permute=False, key=None,
               input_shape="bcn", output_shape="bcn", batch_tile=8):
    """JAX/Pallas equivalent of FPSSampler.forward."""
    if input_shape not in ("bcn", "bnc") or output_shape not in ("bcn", "bnc"):
        raise ValueError("allowed shapes are 'bcn' and 'bnc'")
    if input_shape == "bnc":
        x = jnp.transpose(x, (0, 2, 1))
    B, C, N = x.shape
    if permute:
        # TODO(synk): torch.randperm RNG stream cannot be matched bit-exactly;
        # we use jax.random.permutation for the same semantics.
        if key is None:
            raise ValueError("permute=True requires a PRNG key")
        perm = jax.random.permutation(key, N)
        x = x[:, :, perm]

    # Channel-major layout so batch lands on the sublane axis inside the
    # kernel; pad B up to a multiple of the batch tile (8 = f32 sublanes).
    Bt = batch_tile
    B_pad = pl.cdiv(B, Bt) * Bt
    xt = jnp.transpose(x, (1, 0, 2))                       # (C, B, N)
    if B_pad != B:
        xt = jnp.concatenate(
            [xt, jnp.zeros((C, B_pad - B, N), xt.dtype)], axis=1)

    S = num_out_points
    yt = pl.pallas_call(
        _fps_kernel,
        out_shape=jax.ShapeDtypeStruct((C, B_pad, S), x.dtype),
        grid_spec=pltpu.PrefetchScalarGridSpec(
            num_scalar_prefetch=0,
            grid=(B_pad // Bt,),
            in_specs=[pl.BlockSpec((C, Bt, N), lambda b: (0, b, 0))],
            out_specs=pl.BlockSpec((C, Bt, S), lambda b: (0, b, 0)),
            scratch_shapes=[pltpu.VMEM((C, Bt, S), jnp.float32)],
        ),
        compiler_params=pltpu.CompilerParams(
            dimension_semantics=("parallel",)),
    )(xt)
    y = jnp.transpose(yt[:, :B, :], (1, 0, 2))             # (B, C, S)

    if output_shape == "bnc":
        y = jnp.transpose(y, (0, 2, 1))
    return y


def _fps_reference(x, num_out_points):
    """Pure-JAX reference (same algorithm / same distance expansion)."""
    B, C, N = x.shape

    def one_batch(xb):  # xb: (C, N)
        sq = jnp.sum(xb * xb, axis=0)                     # (N,)

        def body(i, carry):
            farthest, min_dist, idx = carry
            idx = idx.at[i].set(farthest)
            sel = xb[:, farthest]                          # (C,)
            d = sq - 2.0 * jnp.sum(xb * sel[:, None], axis=0) + jnp.sum(sel * sel)
            min_dist = jnp.minimum(min_dist, d)
            farthest = jnp.argmax(min_dist).astype(jnp.int32)
            return farthest, min_dist, idx

        init = (jnp.int32(0), jnp.full((N,), 1e10, jnp.float32),
                jnp.zeros((num_out_points,), jnp.int32))
        _, _, idx = lax.fori_loop(0, num_out_points, body, init)
        return xb[:, idx]

    return jax.vmap(one_batch)(x)


if __name__ == "__main__":
    B, C, N, S = 2, 3, 128, 32
    key = jax.random.PRNGKey(0)
    x = jax.random.normal(key, (B, C, N), dtype=jnp.float32)

    y = fps_sample(x, S, permute=False, input_shape="bcn", output_shape="bcn")
    y = jax.block_until_ready(y)

    assert y.shape == (B, C, S), y.shape
    y_ref = _fps_reference(x, S)
    assert jnp.allclose(y, y_ref, atol=1e-5), "mismatch vs pure-JAX reference"

    print("KERNEL_OK")
</pallas_src>

<mosaic_0001>
module attributes {stable_mosaic.version = 11 : i64} {
  func.func @_fps_kernel(%arg0: i32, %arg1: memref<3x8x128xf32, #tpu.memory_space<vmem>>, %arg2: memref<3x8x32xf32, #tpu.memory_space<vmem>>, %arg3: memref<3x8x32xf32, #tpu.memory_space<vmem>>) attributes {dimension_semantics = [#tpu.dimension_semantics<parallel>], iteration_bounds = array<i64: 1>, scalar_prefetch = 0 : i64, scratch_operands = 1 : i64, tpu.core_type = #tpu.core_type<tc>, window_params = [{transform_indices = @transform_0, window_bounds = array<i64: 3, 8, 128>}, {transform_indices = @transform_1, window_bounds = array<i64: 3, 8, 32>}]} {
    %c0 = arith.constant 0 : index
    %c0_0 = arith.constant 0 : index
    %c0_1 = arith.constant 0 : index
    %0 = vector.load %arg1[%c0, %c0_0, %c0_1] : memref<3x8x128xf32, #tpu.memory_space<vmem>>, vector<3x8x128xf32>
    %1 = tpu.iota {dimensions = array<i32: 1>} : vector<8x128xi32>
    %2 = tpu.iota {dimensions = array<i32: 1>} : vector<8x32xi32>
    %3 = arith.mulf %0, %0 : vector<3x8x128xf32>
    %cst = arith.constant dense<0.000000e+00> : vector<8x128xf32>
    %4 = vector.multi_reduction <add>, %3, %cst [0] : vector<3x8x128xf32> to vector<8x128xf32>
    %cst_2 = arith.constant 0.000000e+00 : f32
    %5 = vector.broadcast %cst_2 : f32 to vector<3x8x32xf32>
    %c0_3 = arith.constant 0 : index
    %c0_4 = arith.constant 0 : index
    %c0_5 = arith.constant 0 : index
    %6 = vector.load %arg3[%c0_3, %c0_4, %c0_5] : memref<3x8x32xf32, #tpu.memory_space<vmem>>, vector<3x8x32xf32>
    tpu.vector_store %arg3[%c0_3, %c0_4, %c0_5], %5 {strides = array<i32>} : memref<3x8x32xf32, #tpu.memory_space<vmem>>, vector<3x8x32xf32>,
    %c0_i32 = arith.constant 0 : i32
    %7 = vector.broadcast %c0_i32 : i32 to vector<8x1xi32>
    %cst_6 = arith.constant 1.000000e+10 : f32
    %8 = vector.broadcast %cst_6 : f32 to vector<8x128xf32>
    %c0_i32_7 = arith.constant 0 : i32
    %c32_i32 = arith.constant 32 : i32
    %9 = arith.addi %c0_i32_7, %c32_i32 : i32
    %c1_i32 = arith.constant 1 : i32
    %10:2 = scf.for %arg4 = %c0_i32_7 to %9 step %c1_i32 iter_args(%arg5 = %7, %arg6 = %8) -> (vector<8x1xi32>, vector<8x128xf32>)  : i32 {
      %13 = vector.broadcast %arg5 : vector<8x1xi32> to vector<8x128xi32>
      %14 = arith.cmpi eq, %1, %13 : vector<8x128xi32>
      %15 = vector.shape_cast %14 : vector<8x128xi1> to vector<1x8x128xi1>
      %cst_15 = arith.constant 0.000000e+00 : f32
      %16 = vector.shape_cast %15 : vector<1x8x128xi1> to vector<1x8x128xi1>
      %17 = vector.broadcast %16 : vector<1x8x128xi1> to vector<3x8x128xi1>
      %18 = vector.broadcast %cst_15 : f32 to vector<3x8x128xf32>
      %19 = arith.select %17, %0, %18 : vector<3x8x128xi1>, vector<3x8x128xf32>
      %cst_16 = arith.constant dense<0.000000e+00> : vector<3x8xf32>
      %20 = vector.multi_reduction <add>, %19, %cst_16 [2] : vector<3x8x128xf32> to vector<3x8xf32>
      %21 = vector.shape_cast %20 : vector<3x8xf32> to vector<3x8x1xf32>
      %22 = vector.shape_cast %2 : vector<8x32xi32> to vector<1x8x32xi32>
      %23 = vector.broadcast %arg4 : i32 to vector<1x8x32xi32>
      %24 = arith.cmpi eq, %22, %23 : vector<1x8x32xi32>
      %c0_17 = arith.constant 0 : index
      %c0_18 = arith.constant 0 : index
      %c0_19 = arith.constant 0 : index
      %25 = vector.load %arg3[%c0_17, %c0_18, %c0_19] : memref<3x8x32xf32, #tpu.memory_space<vmem>>, vector<3x8x32xf32>
      %26 = vector.shape_cast %24 : vector<1x8x32xi1> to vector<1x8x32xi1>
      %27 = vector.broadcast %26 : vector<1x8x32xi1> to vector<3x8x32xi1>
      %28 = vector.shape_cast %21 : vector<3x8x1xf32> to vector<3x8x1xf32>
      %29 = vector.broadcast %28 : vector<3x8x1xf32> to vector<3x8x32xf32>
      %30 = arith.select %27, %29, %25 : vector<3x8x32xi1>, vector<3x8x32xf32>
      %c0_20 = arith.constant 0 : index
      %c0_21 = arith.constant 0 : index
      %c0_22 = arith.constant 0 : index
      %31 = vector.load %arg3[%c0_20, %c0_21, %c0_22] : memref<3x8x32xf32, #tpu.memory_space<vmem>>, vector<3x8x32xf32>
      tpu.vector_store %arg3[%c0_20, %c0_21, %c0_22], %30 {strides = array<i32>} : memref<3x8x32xf32, #tpu.memory_space<vmem>>, vector<3x8x32xf32>,
      %32 = arith.mulf %21, %21 : vector<3x8x1xf32>
      %cst_23 = arith.constant dense<0.000000e+00> : vector<8x1xf32>
      %33 = vector.multi_reduction <add>, %32, %cst_23 [0] : vector<3x8x1xf32> to vector<8x1xf32>
      %34 = vector.broadcast %21 : vector<3x8x1xf32> to vector<3x8x128xf32>
      %35 = arith.mulf %0, %34 : vector<3x8x128xf32>
      %cst_24 = arith.constant dense<0.000000e+00> : vector<8x128xf32>
      %36 = vector.multi_reduction <add>, %35, %cst_24 [0] : vector<3x8x128xf32> to vector<8x128xf32>
      %cst_25 = arith.constant 2.000000e+00 : f32
      %37 = vector.broadcast %cst_25 : f32 to vector<8x128xf32>
      %38 = arith.mulf %37, %36 : vector<8x128xf32>
      %39 = arith.subf %4, %38 : vector<8x128xf32>
      %40 = vector.broadcast %33 : vector<8x1xf32> to vector<8x128xf32>
      %41 = arith.addf %39, %40 : vector<8x128xf32>
      %42 = arith.minimumf %arg6, %41 : vector<8x128xf32>
      %cst_26 = arith.constant dense<0xFF800000> : vector<8xf32>
      %43 = vector.multi_reduction <maximumf>, %42, %cst_26 [1] : vector<8x128xf32> to vector<8xf32>
      %44 = vector.shape_cast %43 : vector<8xf32> to vector<8x1xf32>
      %45 = vector.broadcast %44 : vector<8x1xf32> to vector<8x128xf32>
      %46 = arith.cmpf oeq, %42, %45 : vector<8x128xf32>
      %c128_i32 = arith.constant 128 : i32
      %47 = vector.broadcast %c128_i32 : i32 to vector<8x128xi32>
      %48 = arith.select %46, %1, %47 : vector<8x128xi1>, vector<8x128xi32>
      %cst_27 = arith.constant dense<2147483647> : vector<8xi32>
      %49 = vector.multi_reduction <minsi>, %48, %cst_27 [1] : vector<8x128xi32> to vector<8xi32>
      %50 = vector.shape_cast %49 : vector<8xi32> to vector<8x1xi32>
      scf.yield %50, %42 : vector<8x1xi32>, vector<8x128xf32>
    }
    %c32_i32_8 = arith.constant 32 : i32
    %c0_9 = arith.constant 0 : index
    %c0_10 = arith.constant 0 : index
    %c0_11 = arith.constant 0 : index
    %11 = vector.load %arg3[%c0_9, %c0_10, %c0_11] : memref<3x8x32xf32, #tpu.memory_space<vmem>>, vector<3x8x32xf32>
    %c0_12 = arith.constant 0 : index
    %c0_13 = arith.constant 0 : index
    %c0_14 = arith.constant 0 : index
    %12 = vector.load %arg2[%c0_12, %c0_13, %c0_14] : memref<3x8x32xf32, #tpu.memory_space<vmem>>, vector<3x8x32xf32>
    tpu.vector_store %arg2[%c0_12, %c0_13, %c0_14], %11 {strides = array<i32>} : memref<3x8x32xf32, #tpu.memory_space<vmem>>, vector<3x8x32xf32>,
    return
  }
  func.func @transform_0(%arg0: i32) -> (i32, i32, i32) {
    %c0_i32 = arith.constant 0 : i32
    %c0_i32_0 = arith.constant 0 : i32
    %c0_i32_1 = arith.constant 0 : i32
    return %c0_i32, %arg0, %c0_i32_0 : i32, i32, i32
  }
  func.func @transform_1(%arg0: i32) -> (i32, i32, i32) {
    %c0_i32 = arith.constant 0 : i32
    %c0_i32_0 = arith.constant 0 : i32
    %c0_i32_1 = arith.constant 0 : i32
    return %c0_i32, %arg0, %c0_i32_0 : i32, i32, i32
  }
}

</mosaic_0001>

<llo_original>
// kernel: tpu_custom_call.1
$region0: #{tpu_custom_call.1}
  #allocation0 [shape = 'u32[]', space=smem, size = 0x4, offset = 0x4, fixed_abs, tag = 'smem constant byte address 0x4 - core index']
  #allocation1 [shape = 'u32[144,128]{1,0:T(1,128)}', space=vmem, size = 0x12000, scoped, tag = 'internal scratch']
  #allocation2 [shape = 'f32[3,8,32]{2,1,0:T(8,128)}', space=vmem, size = 0x3000, scoped, tag = 'scratch operand']
  %s0 = inlined_call_operand.hbm [shape: f32[3,8,128], index: 0, kind: input, shape index: {}]
  %s1 = inlined_call_operand.hbm [shape: f32[3,8,32], index: 1, kind: output, shape index: {}]
  %s2 = sld [smem:[#allocation0]]
  $region25: #{tpu_custom_call.1} parent=0
    _
  %s4 = ssub.s32 1, %s2
  %s5 = scalar_select 0, %s4, %s2
  $region1: #{tpu_custom_call.1} parent=0
    #allocation3 [shape = 'u8[12288]{0}', space=vmem, size = 0x3000, scoped, tag = 'input window, operand 0, single buffered']
    #allocation4 [shape = 's32[1]{0}', space=sflag, size = 0x4, scoped, tag = 'scoped memory for tpu_custom_call.1']
    #allocation5 [shape = 's32[1]{0}', space=sflag, size = 0x4, scoped, tag = 'scoped memory for tpu_custom_call.1']
    #allocation6 [shape = 'u8[12288]{0}', space=vmem, size = 0x3000, scoped, tag = 'output window, operand 0, single buffered']
    %6 = vsyncpa [#allocation4], 0
    %7 = vsyncpa [#allocation5], 0
    // Predicated region
    $region2: #{tpu_custom_call.1} parent=1 // pred_check
      _
    $region3: #{tpu_custom_call.1} parent=1 // pred_check_branch
      %9 = sbr.rel (0) target = $region5
    $region4: #{tpu_custom_call.1} parent=1 // pred_region
      %s11 = ssub.s32 384, 384
      %12 = vsyncadd [#allocation4], %s11
      %s13 = sshll.u32 [#allocation3], 4
      %s14 = int_to_ptr.vmem [resolvable:$true] %s13
      %19 = dma.hbm_to_vmem [thread:$0]  %s0, 384, %s14, [#allocation4], 128, 128, 8
    $region5: #{tpu_custom_call.1} parent=1 // pred_fallthru
      _
    // Predicated region
    $region6: #{tpu_custom_call.1} parent=1 // pred_check
      _
    $region7: #{tpu_custom_call.1} parent=1 // pred_check_branch
      %21 = sbr.rel (0) target = $region9
    $region8: #{tpu_custom_call.1} parent=1 // pred_region
      %22 = dma.done [#allocation4], 384
    $region9: #{tpu_custom_call.1} parent=1 // pred_fallthru
      _
    %v23 = vld [vmem:[#allocation3] sm:$0xff]
    %v24 = vld [vmem:[#allocation3 + $0x8] sm:$0xff]
    %v25 = vld [vmem:[#allocation3 + $0x10] sm:$0xff]
    %v26 = vlaneseq
    %v27 = vand.u32 %v26, 127
    %v28 = vmul.f32 %v23, %v23
    %v29 = vmul.f32 %v24, %v24
    %v30 = vmul.f32 %v25, %v25
    %v31 = vadd.f32 %v28, %v29
    %v32 = vadd.f32 %v31, %v30
    %vm33 = vcmask 261120
    %34 = vst.msk [vmem:[#allocation2] sm:$0xff] %vm33, 0.0
    %35 = vst.msk [vmem:[#allocation2 + $0x8] sm:$0xff] %vm33, 0.0
    %36 = vst.msk [vmem:[#allocation2 + $0x10] sm:$0xff] %vm33, 0.0
    loop: start=0, step=1, limit=32
    $region10: #{tpu_custom_call.1} parent=1 // loop_pre_header
      _
    $region11: #{tpu_custom_call.1} parent=1 // loop_header
      %s38 = sphi 0, %s42
      %p39 = scmp.ge.s32.totalorder %s38, 32
      %v43 = vphi 0, %v101
      %v44 = vphi 1e+10, %v83
    $region12: #{tpu_custom_call.1} parent=1 // loop_header_branch
      %41 = sbr.rel (%p39) target = $region16
    $region13: #{tpu_custom_call.1} parent=1 // loop_body
      %vm45 = vcmp.eq.s32.totalorder %v27, %v43
      %v46 = vsel %vm45, 1, 0
      %vm47 = vcmp.eq.s32.totalorder %v46, 1
      %v48 = vsel %vm47, %v23, 0.0
      %v49 = vsel %vm47, %v24, 0.0
      %v50 = vsel %vm47, %v25, 0.0
      %51 = vadd.xlane.f32.xlu0 %v48
      %v52 = vpop.xlane.xlu0 %51
      %53 = vadd.xlane.f32.xlu0 %v49
      %v54 = vpop.xlane.xlu0 %53
      %55 = vadd.xlane.f32.xlu0 %v50
      %v56 = vpop.xlane.xlu0 %55
      %v57 = vstv %s38
      %vm58 = vcmp.eq.s32.totalorder %v27, %v57
      %v59 = vld [vmem:[#allocation2] sm:$0xff]
      %v60 = vld [vmem:[#allocation2 + $0x8] sm:$0xff]
      %v61 = vld [vmem:[#allocation2 + $0x10] sm:$0xff]
      %v62 = vsel %vm58, 1, 0
      %vm63 = vcmp.eq.s32.totalorder %v62, 1
      %v64 = vsel %vm63, %v52, %v59
      %v65 = vsel %vm63, %v54, %v60
      %v66 = vsel %vm63, %v56, %v61
      %67 = vst.msk [vmem:[#allocation2] sm:$0xff] %vm33, %v64
      %68 = vst.msk [vmem:[#allocation2 + $0x8] sm:$0xff] %vm33, %v65
      %69 = vst.msk [vmem:[#allocation2 + $0x10] sm:$0xff] %vm33, %v66
      %v70 = vmul.f32 %v52, %v52
      %v71 = vmul.f32 %v54, %v54
      %v72 = vmul.f32 %v56, %v56
      %v73 = vadd.f32 %v70, %v71
      %v74 = vadd.f32 %v73, %v72
      %v75 = vmul.f32 %v23, %v52
      %v76 = vmul.f32 %v24, %v54
      %v77 = vmul.f32 %v25, %v56
      %v78 = vadd.f32 %v75, %v76
      %v79 = vadd.f32 %v78, %v77
      %v80 = vmul.f32 %v79, 2.0
      %v81 = vsub.f32 %v32, %v80
      %v82 = vadd.f32 %v81, %v74
      %v83 = vmin.f32 %v44, %v82
      %84 = vmax.xlane.f32.xlu0 %v83
      %v85 = vpop.xlane.xlu0 %84
      %vm86 = vcmp.eq.f32.partialorder %v83, %v85
      %v87 = vsel %vm86, %v27, 128
      %v88 = vand.u32 %v87, 65535
      %v89 = vshra.s32 %v87, 16
      %v90 = vcvt.s32.f32 %v88
      %v91 = vcvt.s32.f32 %v89
      %92 = vmin.xlane.f32.xlu0 %v91
      %v93 = vpop.xlane.xlu0 %92
      %vm94 = vcmp.eq.f32.partialorder %v91, %v93
      %v95 = vsel %vm94, %v90, inf
      %96 = vmin.xlane.f32.xlu0 %v95
      %v97 = vpop.xlane.xlu0 %96
      %v98 = vcvt.f32.s32 %v97
      %v99 = vcvt.f32.s32 %v93
      %v100 = vshll.u32 %v99, 16
      %v101 = vadd.s32 %v100, %v98
    $region14: #{tpu_custom_call.1} parent=1 // loop_footer
      %s42 = sadd.s32 1, %s38
    $region15: #{tpu_custom_call.1} parent=1 // loop_footer_branch
      %37 = sbr.rel target = $region11
    $region16: #{tpu_custom_call.1} parent=1 // loop_exit
      _
    %v102 = vld [vmem:[#allocation2] sm:$0xff]
    %v103 = vld [vmem:[#allocation2 + $0x8] sm:$0xff]
    %v104 = vld [vmem:[#allocation2 + $0x10] sm:$0xff]
    %105 = vst.msk [vmem:[#allocation6] sm:$0xff] %vm33, %v102
    %106 = vst.msk [vmem:[#allocation6 + $0x8] sm:$0xff] %vm33, %v103
    %107 = vst.msk [vmem:[#allocation6 + $0x10] sm:$0xff] %vm33, %v104
    // Predicated region
    $region17: #{tpu_custom_call.1} parent=1 // pred_check
      _
    $region18: #{tpu_custom_call.1} parent=1 // pred_check_branch
      %109 = sbr.rel (0) target = $region20
    $region19: #{tpu_custom_call.1} parent=1 // pred_region
      %s111 = ssub.s32 384, 384
      %112 = vsyncadd [#allocation5], %s111
      %s113 = sshll.u32 [#allocation6], 4
      %s114 = int_to_ptr.vmem [resolvable:$true] %s113
      %119 = dma.vmem_to_hbm [thread:$0]  %s114, 384, %s1, [#allocation5], 128, 128, 8
    $region20: #{tpu_custom_call.1} parent=1 // pred_fallthru
      _
    // Predicated region
    $region21: #{tpu_custom_call.1} parent=1 // pred_check
      _
    $region22: #{tpu_custom_call.1} parent=1 // pred_check_branch
      %121 = sbr.rel (0) target = $region24
    $region23: #{tpu_custom_call.1} parent=1 // pred_region
      %122 = dma.done [#allocation5], 384
    $region24: #{tpu_custom_call.1} parent=1 // pred_fallthru
      _
    %123 = vsyncpa [#allocation4], 1
    %124 = vsyncpa [#allocation5], 1

</llo_original>
